<compile_context>
chip_gen: v5e
topology: v5e:2x2
jax: 0.10.0
libtpu: 0.0.40
codegen_flags: <defaults>
</compile_context>

<pallas_src>
import functools

import jax
import jax.numpy as jnp
from jax import lax
from jax.experimental import pallas as pl
from jax.experimental.pallas import tpu as pltpu


def _round_up(x, m):
    return (x + m - 1) // m * m


def _make_kernel(scale, n_real, n_pad, cp, tile):
    needs_mask = n_pad != n_real
    neg_big = -1e30  # finite "masked" score: exp() underflows to exactly 0

    def kernel(xq_ref, xkv_ref, wq_ref, bq_ref, wkv_ref, bkv_ref, o_ref,
               q_sc, m_sc, l_sc, acc_sc):
        j = pl.program_id(1)

        @pl.when(j == 0)
        def _():
            # Project this query-row tile once and cache it for the whole KV
            # loop; fold the softmax scale in so scores need no extra rescale.
            q = jnp.dot(xq_ref[...], wq_ref[...],
                        preferred_element_type=jnp.float32) + bq_ref[...]
            q_sc[...] = q * scale
            m_sc[...] = jnp.full_like(m_sc, neg_big)
            l_sc[...] = jnp.zeros_like(l_sc)
            acc_sc[...] = jnp.zeros_like(acc_sc)

        # Fused key|value projection of the current KV tile (one MXU pass);
        # 128-lane aligned slices, no relayout.
        kv = jnp.dot(xkv_ref[...], wkv_ref[...],
                     preferred_element_type=jnp.float32) + bkv_ref[...]
        k = kv[:, :cp]
        v = kv[:, cp:]

        # Scores: contract on the channel axis without materializing k.T.
        s = lax.dot_general(
            q_sc[...], k,
            dimension_numbers=(((1,), (1,)), ((), ())),
            preferred_element_type=jnp.float32,
        )

        if needs_mask:
            # Padded key rows (zero x rows -> bias-only k/v) must not attend.
            col = j * tile + lax.broadcasted_iota(jnp.int32, s.shape, 1)
            s = jnp.where(col < n_real, s, neg_big)

        # Online (flash-style) softmax update.
        m_prev = m_sc[...]
        m_new = jnp.maximum(m_prev, jnp.max(s, axis=-1, keepdims=True))
        alpha = jnp.exp(m_prev - m_new)
        p = jnp.exp(s - m_new)
        l_sc[...] = alpha * l_sc[...] + jnp.sum(p, axis=-1, keepdims=True)
        acc_sc[...] = alpha * acc_sc[...] + jnp.dot(
            p, v, preferred_element_type=jnp.float32)
        m_sc[...] = m_new

        @pl.when(j == pl.num_programs(1) - 1)
        def _():
            # Lane-dense (Cp multiple of 128) store; reciprocal on the EUP.
            o_ref[...] = (acc_sc[...] *
                          pl.reciprocal(l_sc[...], approx=True)).astype(o_ref.dtype)

    return kernel


@functools.partial(jax.jit, static_argnames=("compute_dtype", "tile"))
def spatial_attention_layer(x, edge_index, params, *, compute_dtype=None, tile=256):
    """Pallas wrapper. `edge_index` is unused (matches the PyTorch forward)."""
    del edge_index  # not used by the reference forward pass
    n, c_in = x.shape
    wq, bq = params["query"]
    wk, bk = params["key"]
    wv, bv = params["value"]
    c_out = wq.shape[0]
    scale = float(c_out) ** (-0.5)

    assert tile % 8 == 0, "tile must be a multiple of 8 sublanes"
    cp = _round_up(c_out, 128)            # lane-dense channel padding
    t = max(8, min(tile, _round_up(n, 8)))  # row tile (multiple of 8 sublanes)
    n_pad = _round_up(n, t)
    grid = (n_pad // t, n_pad // t)       # (query tiles, kv tiles)

    in_dtype = x.dtype if compute_dtype is None else compute_dtype

    # PyTorch Linear stores W as (out, in); transpose to (in, out) and zero-pad
    # the output channels up to Cp so matmuls / stores are full-lane.
    def pad_w(w):
        return jnp.pad(w.T, ((0, 0), (0, cp - c_out))).astype(in_dtype)

    def pad_b(b):
        return jnp.pad(b, (0, cp - c_out)).reshape(1, cp).astype(jnp.float32)

    wq_p = pad_w(wq)                                          # (C_in, Cp)
    bq_p = pad_b(bq)                                          # (1, Cp)
    wkv_p = jnp.concatenate([pad_w(wk), pad_w(wv)], axis=1)   # (C_in, 2*Cp)
    bkv_p = jnp.concatenate([pad_b(bk), pad_b(bv)], axis=1)   # (1, 2*Cp)

    x_p = jnp.pad(x, ((0, n_pad - n), (0, 0))).astype(in_dtype)

    kernel = _make_kernel(scale, n, n_pad, cp, t)

    out = pl.pallas_call(
        kernel,
        out_shape=jax.ShapeDtypeStruct((n_pad, cp), jnp.float32),
        grid=grid,
        in_specs=[
            pl.BlockSpec((t, c_in), lambda i, j: (i, 0)),      # query-row tile of x
            pl.BlockSpec((t, c_in), lambda i, j: (j, 0)),      # kv-row tile of x
            pl.BlockSpec((c_in, cp), lambda i, j: (0, 0)),     # Wq (VMEM-resident)
            pl.BlockSpec((1, cp), lambda i, j: (0, 0)),        # bq
            pl.BlockSpec((c_in, 2 * cp), lambda i, j: (0, 0)),  # fused [Wk | Wv]
            pl.BlockSpec((1, 2 * cp), lambda i, j: (0, 0)),    # fused [bk | bv]
        ],
        out_specs=pl.BlockSpec((t, cp), lambda i, j: (i, 0)),
        scratch_shapes=[
            pltpu.VMEM((t, cp), jnp.float32),   # cached (scaled) q tile
            pltpu.VMEM((t, 1), jnp.float32),    # running row max
            pltpu.VMEM((t, 1), jnp.float32),    # running denominator
            pltpu.VMEM((t, cp), jnp.float32),   # output accumulator
        ],
        compiler_params=pltpu.CompilerParams(
            dimension_semantics=("parallel", "arbitrary"),     # megacore over q tiles
        ),
    )(x_p, x_p, wq_p, bq_p, wkv_p, bkv_p)

    # Drop row padding and lane padding; restore caller dtype.
    return out[:n, :c_out].astype(x.dtype)


def init_params(key, in_channels, out_channels):
    """Deterministic synthetic init (PyTorch-Linear-like uniform ranges)."""
    ks = jax.random.split(key, 6)
    bound = 1.0 / (in_channels ** 0.5)
    mk_w = lambda k: jax.random.uniform(
        k, (out_channels, in_channels), jnp.float32, -bound, bound)
    mk_b = lambda k: jax.random.uniform(
        k, (out_channels,), jnp.float32, -bound, bound)
    return {
        "query": (mk_w(ks[0]), mk_b(ks[1])),
        "key": (mk_w(ks[2]), mk_b(ks[3])),
        "value": (mk_w(ks[4]), mk_b(ks[5])),
    }


def reference(x, params):
    """Pure-JAX reference mirroring the PyTorch forward."""
    wq, bq = params["query"]
    wk, bk = params["key"]
    wv, bv = params["value"]
    q = x @ wq.T + bq
    k = x @ wk.T + bk
    v = x @ wv.T + bv
    scale = wq.shape[0] ** (-0.5)
    s = (q @ k.T) * scale
    a = jax.nn.softmax(s, axis=-1)
    return a @ v


if __name__ == "__main__":
    key = jax.random.PRNGKey(0)
    k_x, k_x2, k_x3, k_p = jax.random.split(key, 4)

    in_channels, out_channels = 8, 32
    params = init_params(k_p, in_channels, out_channels)
    edge_index = jnp.zeros((2, 4), dtype=jnp.int32)  # present in signature, unused

    # Case 1: N=16 (aligned, single tile), f32 operands.
    x1 = jax.random.normal(k_x, (16, in_channels), jnp.float32)
    out1 = jax.block_until_ready(spatial_attention_layer(x1, edge_index, params))
    ref1 = reference(x1, params)
    assert out1.shape == (16, out_channels)
    assert jnp.allclose(out1, ref1, atol=5e-3, rtol=5e-3), "f32 mismatch vs reference"

    # Case 2: N=20, tiny tile=8 -> 3x3 grid, online softmax + key masking.
    x2 = jax.random.normal(k_x2, (20, in_channels), jnp.float32)
    out2 = jax.block_until_ready(
        spatial_attention_layer(x2, edge_index, params, tile=8))
    ref2 = reference(x2, params)
    assert out2.shape == (20, out_channels)
    assert jnp.allclose(out2, ref2, atol=5e-3, rtol=5e-3), "ragged mismatch vs reference"

    # Case 3: N=300, tile=128 -> multi-tile flash path at a realistic tile size.
    x3 = jax.random.normal(k_x3, (300, in_channels), jnp.float32)
    out3 = jax.block_until_ready(
        spatial_attention_layer(x3, edge_index, params, tile=128))
    ref3 = reference(x3, params)
    assert out3.shape == (300, out_channels)
    assert jnp.allclose(out3, ref3, atol=5e-3, rtol=5e-3), "large-N mismatch vs reference"

    # Case 4: bf16 MXU operands for the projections, f32 accumulation / softmax.
    out4 = jax.block_until_ready(
        spatial_attention_layer(x1, edge_index, params, compute_dtype=jnp.bfloat16))
    assert out4.shape == (16, out_channels)
    assert jnp.allclose(out4, ref1, atol=5e-2, rtol=5e-2), "bf16 mismatch vs reference"

    print("KERNEL_OK")
</pallas_src>

<mosaic_0001>
module attributes {stable_mosaic.version = 11 : i64} {
  func.func @kernel(%arg0: i32, %arg1: i32, %arg2: memref<16x8xf32, #tpu.memory_space<vmem>>, %arg3: memref<16x8xf32, #tpu.memory_space<vmem>>, %arg4: memref<8x128xf32, #tpu.memory_space<vmem>>, %arg5: memref<1x128xf32, #tpu.memory_space<vmem>>, %arg6: memref<8x256xf32, #tpu.memory_space<vmem>>, %arg7: memref<1x256xf32, #tpu.memory_space<vmem>>, %arg8: memref<16x128xf32, #tpu.memory_space<vmem>>, %arg9: memref<16x128xf32, #tpu.memory_space<vmem>>, %arg10: memref<16x1xf32, #tpu.memory_space<vmem>>, %arg11: memref<16x1xf32, #tpu.memory_space<vmem>>, %arg12: memref<16x128xf32, #tpu.memory_space<vmem>>) attributes {dimension_semantics = [#tpu.dimension_semantics<parallel>, #tpu.dimension_semantics<arbitrary>], iteration_bounds = array<i64: 1, 1>, scalar_prefetch = 0 : i64, scratch_operands = 4 : i64, tpu.core_type = #tpu.core_type<tc>, window_params = [{transform_indices = @transform_0, window_bounds = array<i64: 16, 8>}, {transform_indices = @transform_1, window_bounds = array<i64: 16, 8>}, {pipeline_mode = #tpu.pipeline_mode<synchronous>, transform_indices = @transform_2, window_bounds = array<i64: 8, 128>}, {pipeline_mode = #tpu.pipeline_mode<synchronous>, transform_indices = @transform_3, window_bounds = array<i64: 1, 128>}, {pipeline_mode = #tpu.pipeline_mode<synchronous>, transform_indices = @transform_4, window_bounds = array<i64: 8, 256>}, {pipeline_mode = #tpu.pipeline_mode<synchronous>, transform_indices = @transform_5, window_bounds = array<i64: 1, 256>}, {transform_indices = @transform_6, window_bounds = array<i64: 16, 128>}]} {
    %c0_i32 = arith.constant 0 : i32
    %0 = arith.cmpi eq, %arg1, %c0_i32 : i32
    %1 = arith.extui %0 : i1 to i32
    %c0_i32_0 = arith.constant 0 : i32
    %2 = arith.cmpi ne, %1, %c0_i32_0 : i32
    scf.if %2 {
      %c0_26 = arith.constant 0 : index
      %c0_27 = arith.constant 0 : index
      %38 = vector.load %arg2[%c0_26, %c0_27] : memref<16x8xf32, #tpu.memory_space<vmem>>, vector<16x8xf32>
      %c0_28 = arith.constant 0 : index
      %c0_29 = arith.constant 0 : index
      %39 = vector.load %arg4[%c0_28, %c0_29] : memref<8x128xf32, #tpu.memory_space<vmem>>, vector<8x128xf32>
      %cst_30 = arith.constant dense<0.000000e+00> : vector<16x128xf32>
      %40 = tpu.matmul %38, %39, %cst_30 {dimension_numbers = #tpu.dot_dimension_numbers<[1], [0], [0], [1], [0, 0, 1, 1], [], []>} : vector<16x8xf32>, vector<8x128xf32>, vector<16x128xf32> -> vector<16x128xf32>
      %c0_31 = arith.constant 0 : index
      %c0_32 = arith.constant 0 : index
      %41 = vector.load %arg5[%c0_31, %c0_32] : memref<1x128xf32, #tpu.memory_space<vmem>>, vector<1x128xf32>
      %42 = vector.broadcast %41 : vector<1x128xf32> to vector<16x128xf32>
      %43 = arith.addf %40, %42 : vector<16x128xf32>
      %cst_33 = arith.constant 0.176776692 : f32
      %44 = vector.broadcast %cst_33 : f32 to vector<16x128xf32>
      %45 = arith.mulf %43, %44 : vector<16x128xf32>
      %c0_34 = arith.constant 0 : index
      %c0_35 = arith.constant 0 : index
      %46 = vector.load %arg9[%c0_34, %c0_35] : memref<16x128xf32, #tpu.memory_space<vmem>>, vector<16x128xf32>
      tpu.vector_store %arg9[%c0_34, %c0_35], %45 {strides = array<i32>} : memref<16x128xf32, #tpu.memory_space<vmem>>, vector<16x128xf32>,
      %cst_36 = arith.constant -1.000000e+30 : f32
      %47 = vector.broadcast %cst_36 : f32 to vector<16x1xf32>
      %c0_37 = arith.constant 0 : index
      %c0_38 = arith.constant 0 : index
      %48 = vector.load %arg10[%c0_37, %c0_38] : memref<16x1xf32, #tpu.memory_space<vmem>>, vector<16x1xf32>
      tpu.vector_store %arg10[%c0_37, %c0_38], %47 {strides = array<i32>} : memref<16x1xf32, #tpu.memory_space<vmem>>, vector<16x1xf32>,
      %cst_39 = arith.constant 0.000000e+00 : f32
      %49 = vector.broadcast %cst_39 : f32 to vector<16x1xf32>
      %c0_40 = arith.constant 0 : index
      %c0_41 = arith.constant 0 : index
      %50 = vector.load %arg11[%c0_40, %c0_41] : memref<16x1xf32, #tpu.memory_space<vmem>>, vector<16x1xf32>
      tpu.vector_store %arg11[%c0_40, %c0_41], %49 {strides = array<i32>} : memref<16x1xf32, #tpu.memory_space<vmem>>, vector<16x1xf32>,
      %cst_42 = arith.constant 0.000000e+00 : f32
      %51 = vector.broadcast %cst_42 : f32 to vector<16x128xf32>
      %c0_43 = arith.constant 0 : index
      %c0_44 = arith.constant 0 : index
      %52 = vector.load %arg12[%c0_43, %c0_44] : memref<16x128xf32, #tpu.memory_space<vmem>>, vector<16x128xf32>
      tpu.vector_store %arg12[%c0_43, %c0_44], %51 {strides = array<i32>} : memref<16x128xf32, #tpu.memory_space<vmem>>, vector<16x128xf32>,
    } else {
    }
    %c0 = arith.constant 0 : index
    %c0_1 = arith.constant 0 : index
    %3 = vector.load %arg3[%c0, %c0_1] : memref<16x8xf32, #tpu.memory_space<vmem>>, vector<16x8xf32>
    %c0_2 = arith.constant 0 : index
    %c0_3 = arith.constant 0 : index
    %4 = vector.load %arg6[%c0_2, %c0_3] : memref<8x256xf32, #tpu.memory_space<vmem>>, vector<8x256xf32>
    %cst = arith.constant dense<0.000000e+00> : vector<16x256xf32>
    %5 = tpu.matmul %3, %4, %cst {dimension_numbers = #tpu.dot_dimension_numbers<[1], [0], [0], [1], [0, 0, 1, 1], [], []>} : vector<16x8xf32>, vector<8x256xf32>, vector<16x256xf32> -> vector<16x256xf32>
    %c0_4 = arith.constant 0 : index
    %c0_5 = arith.constant 0 : index
    %6 = vector.load %arg7[%c0_4, %c0_5] : memref<1x256xf32, #tpu.memory_space<vmem>>, vector<1x256xf32>
    %7 = vector.broadcast %6 : vector<1x256xf32> to vector<16x256xf32>
    %8 = arith.addf %5, %7 : vector<16x256xf32>
    %9 = vector.extract_strided_slice %8 {offsets = [0, 0], sizes = [16, 128], strides = [1, 1]} : vector<16x256xf32> to vector<16x128xf32>
    %10 = vector.extract_strided_slice %8 {offsets = [0, 128], sizes = [16, 128], strides = [1, 1]} : vector<16x256xf32> to vector<16x128xf32>
    %c0_6 = arith.constant 0 : index
    %c0_7 = arith.constant 0 : index
    %11 = vector.load %arg9[%c0_6, %c0_7] : memref<16x128xf32, #tpu.memory_space<vmem>>, vector<16x128xf32>
    %cst_8 = arith.constant dense<0.000000e+00> : vector<16x16xf32>
    %12 = tpu.matmul %11, %9, %cst_8 {dimension_numbers = #tpu.dot_dimension_numbers<[1], [1], [0], [0], [0, 0, 1, 0], [], []>} : vector<16x128xf32>, vector<16x128xf32>, vector<16x16xf32> -> vector<16x16xf32>
    %c0_9 = arith.constant 0 : index
    %c0_10 = arith.constant 0 : index
    %13 = vector.load %arg10[%c0_9, %c0_10] : memref<16x1xf32, #tpu.memory_space<vmem>>, vector<16x1xf32>
    %cst_11 = arith.constant dense<0xFF800000> : vector<16xf32>
    %14 = vector.multi_reduction <maximumf>, %12, %cst_11 [1] : vector<16x16xf32> to vector<16xf32>
    %15 = vector.shape_cast %14 : vector<16xf32> to vector<16x1xf32>
    %16 = arith.maximumf %13, %15 : vector<16x1xf32>
    %17 = arith.subf %13, %16 : vector<16x1xf32>
    %18 = math.exp %17 : vector<16x1xf32>
    %19 = vector.broadcast %16 : vector<16x1xf32> to vector<16x16xf32>
    %20 = arith.subf %12, %19 : vector<16x16xf32>
    %21 = math.exp %20 : vector<16x16xf32>
    %c0_12 = arith.constant 0 : index
    %c0_13 = arith.constant 0 : index
    %22 = vector.load %arg11[%c0_12, %c0_13] : memref<16x1xf32, #tpu.memory_space<vmem>>, vector<16x1xf32>
    %23 = arith.mulf %18, %22 : vector<16x1xf32>
    %cst_14 = arith.constant dense<0.000000e+00> : vector<16xf32>
    %24 = vector.multi_reduction <add>, %21, %cst_14 [1] : vector<16x16xf32> to vector<16xf32>
    %25 = vector.shape_cast %24 : vector<16xf32> to vector<16x1xf32>
    %26 = arith.addf %23, %25 : vector<16x1xf32>
    %c0_15 = arith.constant 0 : index
    %c0_16 = arith.constant 0 : index
    %27 = vector.load %arg11[%c0_15, %c0_16] : memref<16x1xf32, #tpu.memory_space<vmem>>, vector<16x1xf32>
    tpu.vector_store %arg11[%c0_15, %c0_16], %26 {strides = array<i32>} : memref<16x1xf32, #tpu.memory_space<vmem>>, vector<16x1xf32>,
    %c0_17 = arith.constant 0 : index
    %c0_18 = arith.constant 0 : index
    %28 = vector.load %arg12[%c0_17, %c0_18] : memref<16x128xf32, #tpu.memory_space<vmem>>, vector<16x128xf32>
    %29 = vector.broadcast %18 : vector<16x1xf32> to vector<16x128xf32>
    %30 = arith.mulf %29, %28 : vector<16x128xf32>
    %cst_19 = arith.constant dense<0.000000e+00> : vector<16x128xf32>
    %31 = tpu.matmul %21, %10, %cst_19 {dimension_numbers = #tpu.dot_dimension_numbers<[1], [0], [0], [1], [0, 0, 1, 1], [], []>} : vector<16x16xf32>, vector<16x128xf32>, vector<16x128xf32> -> vector<16x128xf32>
    %32 = arith.addf %30, %31 : vector<16x128xf32>
    %c0_20 = arith.constant 0 : index
    %c0_21 = arith.constant 0 : index
    %33 = vector.load %arg12[%c0_20, %c0_21] : memref<16x128xf32, #tpu.memory_space<vmem>>, vector<16x128xf32>
    tpu.vector_store %arg12[%c0_20, %c0_21], %32 {strides = array<i32>} : memref<16x128xf32, #tpu.memory_space<vmem>>, vector<16x128xf32>,
    %c0_22 = arith.constant 0 : index
    %c0_23 = arith.constant 0 : index
    %34 = vector.load %arg10[%c0_22, %c0_23] : memref<16x1xf32, #tpu.memory_space<vmem>>, vector<16x1xf32>
    tpu.vector_store %arg10[%c0_22, %c0_23], %16 {strides = array<i32>} : memref<16x1xf32, #tpu.memory_space<vmem>>, vector<16x1xf32>,
    %c0_i32_24 = arith.constant 0 : i32
    %35 = arith.cmpi eq, %arg1, %c0_i32_24 : i32
    %36 = arith.extui %35 : i1 to i32
    %c0_i32_25 = arith.constant 0 : i32
    %37 = arith.cmpi ne, %36, %c0_i32_25 : i32
    scf.if %37 {
      %c0_26 = arith.constant 0 : index
      %c0_27 = arith.constant 0 : index
      %38 = vector.load %arg12[%c0_26, %c0_27] : memref<16x128xf32, #tpu.memory_space<vmem>>, vector<16x128xf32>
      %c0_28 = arith.constant 0 : index
      %c0_29 = arith.constant 0 : index
      %39 = vector.load %arg11[%c0_28, %c0_29] : memref<16x1xf32, #tpu.memory_space<vmem>>, vector<16x1xf32>
      %40 = tpu.reciprocal %39 {approx = true} : vector<16x1xf32> -> vector<16x1xf32>
      %41 = vector.broadcast %40 : vector<16x1xf32> to vector<16x128xf32>
      %42 = arith.mulf %38, %41 : vector<16x128xf32>
      %c0_30 = arith.constant 0 : index
      %c0_31 = arith.constant 0 : index
      %43 = vector.load %arg8[%c0_30, %c0_31] : memref<16x128xf32, #tpu.memory_space<vmem>>, vector<16x128xf32>
      tpu.vector_store %arg8[%c0_30, %c0_31], %42 {strides = array<i32>} : memref<16x128xf32, #tpu.memory_space<vmem>>, vector<16x128xf32>,
    } else {
    }
    return
  }
  func.func @transform_0(%arg0: i32, %arg1: i32) -> (i32, i32) {
    %c0_i32 = arith.constant 0 : i32
    %c0_i32_0 = arith.constant 0 : i32
    return %arg0, %c0_i32 : i32, i32
  }
  func.func @transform_1(%arg0: i32, %arg1: i32) -> (i32, i32) {
    %c0_i32 = arith.constant 0 : i32
    %c0_i32_0 = arith.constant 0 : i32
    return %arg1, %c0_i32 : i32, i32
  }
  func.func @transform_2(%arg0: i32, %arg1: i32) -> (i32, i32) {
    %c0_i32 = arith.constant 0 : i32
    %c0_i32_0 = arith.constant 0 : i32
    %c0_i32_1 = arith.constant 0 : i32
    return %c0_i32, %c0_i32_0 : i32, i32
  }
  func.func @transform_3(%arg0: i32, %arg1: i32) -> (i32, i32) {
    %c0_i32 = arith.constant 0 : i32
    %c0_i32_0 = arith.constant 0 : i32
    %c0_i32_1 = arith.constant 0 : i32
    return %c0_i32, %c0_i32_0 : i32, i32
  }
  func.func @transform_4(%arg0: i32, %arg1: i32) -> (i32, i32) {
    %c0_i32 = arith.constant 0 : i32
    %c0_i32_0 = arith.constant 0 : i32
    %c0_i32_1 = arith.constant 0 : i32
    return %c0_i32, %c0_i32_0 : i32, i32
  }
  func.func @transform_5(%arg0: i32, %arg1: i32) -> (i32, i32) {
    %c0_i32 = arith.constant 0 : i32
    %c0_i32_0 = arith.constant 0 : i32
    %c0_i32_1 = arith.constant 0 : i32
    return %c0_i32, %c0_i32_0 : i32, i32
  }
  func.func @transform_6(%arg0: i32, %arg1: i32) -> (i32, i32) {
    %c0_i32 = arith.constant 0 : i32
    %c0_i32_0 = arith.constant 0 : i32
    return %arg0, %c0_i32 : i32, i32
  }
}

</mosaic_0001>

<llo_original>
// kernel: spatial_attention_layer.1
$region0: #{spatial_attention_layer.1}
  #allocation0 [shape = 'u32[]', space=smem, size = 0x4, offset = 0x4, fixed_abs, tag = 'smem constant byte address 0x4 - core index']
  #allocation1 [shape = 'u32[72,128]{1,0:T(1,128)}', space=vmem, size = 0x9000, scoped, tag = 'internal scratch']
  #allocation2 [shape = 'f32[16,128]{1,0:T(8,128)}', space=vmem, size = 0x2000, scoped, tag = 'scratch operand']
  #allocation3 [shape = 'f32[16,1]{1,0:T(8,128)}', space=vmem, size = 0x2000, scoped, tag = 'scratch operand']
  #allocation4 [shape = 'f32[16,1]{1,0:T(8,128)}', space=vmem, size = 0x2000, scoped, tag = 'scratch operand']
  #allocation5 [shape = 'f32[16,128]{1,0:T(8,128)}', space=vmem, size = 0x2000, scoped, tag = 'scratch operand']
  %s0 = inlined_call_operand.vmem [shape: f32[16,8], index: 0, kind: input, shape index: {}, may-alias: {0,1}]
  %s1 = inlined_call_operand.vmem [shape: f32[16,8], index: 1, kind: input, shape index: {}, may-alias: {0,1}]
  %s2 = inlined_call_operand.vmem [shape: f32[8,128], index: 2, kind: input, shape index: {}]
  %s3 = inlined_call_operand.vmem [shape: f32[1,128], index: 3, kind: input, shape index: {}]
  %s4 = inlined_call_operand.vmem [shape: f32[8,256], index: 4, kind: input, shape index: {}]
  %s5 = inlined_call_operand.vmem [shape: f32[1,256], index: 5, kind: input, shape index: {}]
  %s6 = inlined_call_operand.hbm [shape: f32[16,128], index: 6, kind: output, shape index: {}]
  %s7 = sld [smem:[#allocation0]]
  $region42: #{spatial_attention_layer.1} parent=0
    _
  %s9 = ssub.s32 1, %s7
  %s10 = scalar_select 0, %s9, %s7
  $region1: #{spatial_attention_layer.1} parent=0
    #allocation6 [shape = 'u8[8192]{0}', space=vmem, size = 0x2000, scoped, tag = 'output window, operand 0, single buffered']
    #allocation7 [shape = 's32[1]{0}', space=sflag, size = 0x4, scoped, tag = 'scoped memory for spatial_attention_layer.1']
    %11 = vsyncpa [#allocation7], 0
    // Predicated region
    $region2: #{spatial_attention_layer.1} parent=1 // pred_check
      _
    $region3: #{spatial_attention_layer.1} parent=1 // pred_check_branch
      %13 = sbr.rel (0) target = $region5
    $region4: #{spatial_attention_layer.1} parent=1 // pred_region
      _
    $region5: #{spatial_attention_layer.1} parent=1 // pred_fallthru
      _
    // Predicated region
    $region6: #{spatial_attention_layer.1} parent=1 // pred_check
      _
    $region7: #{spatial_attention_layer.1} parent=1 // pred_check_branch
      %15 = sbr.rel (0) target = $region9
    $region8: #{spatial_attention_layer.1} parent=1 // pred_region
      _
    $region9: #{spatial_attention_layer.1} parent=1 // pred_fallthru
      _
    // Predicated region
    $region10: #{spatial_attention_layer.1} parent=1 // pred_check
      _
    $region11: #{spatial_attention_layer.1} parent=1 // pred_check_branch
      %17 = sbr.rel (0) target = $region13
    $region12: #{spatial_attention_layer.1} parent=1 // pred_region
      _
    $region13: #{spatial_attention_layer.1} parent=1 // pred_fallthru
      _
    // Predicated region
    $region14: #{spatial_attention_layer.1} parent=1 // pred_check
      _
    $region15: #{spatial_attention_layer.1} parent=1 // pred_check_branch
      %19 = sbr.rel (0) target = $region17
    $region16: #{spatial_attention_layer.1} parent=1 // pred_region
      _
    $region17: #{spatial_attention_layer.1} parent=1 // pred_fallthru
      _
    // Predicated region
    $region18: #{spatial_attention_layer.1} parent=1 // pred_check
      _
    $region19: #{spatial_attention_layer.1} parent=1 // pred_check_branch
      %21 = sbr.rel (0) target = $region21
    $region20: #{spatial_attention_layer.1} parent=1 // pred_region
      _
    $region21: #{spatial_attention_layer.1} parent=1 // pred_fallthru
      _
    // Predicated region
    $region22: #{spatial_attention_layer.1} parent=1 // pred_check
      _
    $region23: #{spatial_attention_layer.1} parent=1 // pred_check_branch
      %23 = sbr.rel (0) target = $region25
    $region24: #{spatial_attention_layer.1} parent=1 // pred_region
      _
    $region25: #{spatial_attention_layer.1} parent=1 // pred_fallthru
      _
    %p24 = scmp.eq.s32.totalorder 0, 0
    // Predicated region
    $region26: #{spatial_attention_layer.1} parent=1 // pred_check
      %p25 = pneg %p24
    $region27: #{spatial_attention_layer.1} parent=1 // pred_check_branch
      %27 = sbr.rel (%p25) target = $region29
    $region28: #{spatial_attention_layer.1} parent=1 // pred_region
      %v28 = vld [vmem:[%s0] sm:$0xff]
      %v29 = vld [vmem:[%s0 + $0x8] sm:$0xff]
      %v30 = vld [vmem:[%s2] sm:$0xff]
      %v31 = vld [vmem:[%s3] sm:$0x1]
      %v33 = vperm.slane %v31, 0
      %vm35 = vcmask 64512
      %v37 = vsel %vm35, %v28, 0
      %v40 = vsel %vm35, %v29, 0
      %42 = vmatpush.msra.mxu0 0.0
      %43 = vmatpush.msra.mxu0 0.0
      %44 = vmatpush.msra.mxu0 0.0
      %45 = vmatpush.msra.mxu0 0.0
      %46 = vmatpush.msra.mxu0 0.0
      %47 = vmatpush.msra.mxu0 0.0
      %48 = vmatpush.msra.mxu0 0.0
      %49 = vmatpush.msra.mxu0 0.0
      %50 = vmatpush.msra.mxu0 0.0
      %51 = vmatpush.msra.mxu0 0.0
      %52 = vmatpush.msra.mxu0 0.0
      %53 = vmatpush.msra.mxu0 0.0
      %54 = vmatpush.msra.mxu0 0.0
      %55 = vmatpush.msra.mxu0 0.0
      %56 = vmatpush.msra.mxu0 0.0
      %57 = vmatpush.msra.mxu0 %v30
      %58 = vmatmul.f32.gmra.mxu0 %v37
      %v59 = vpop.f32.mrf.mxu0
      %v60 = vadd.f32 %v33, %v59
      %61 = vmatmul.f32.gmra.mxu0 %v40
      %v62 = vpop.f32.mrf.mxu0
      %v63 = vadd.f32 %v33, %v62
      %64 = vdwg.mxu0
      %v65 = vmul.f32 %v60, 0.17677669
      %v66 = vmul.f32 %v63, 0.17677669
      %67 = vst [vmem:[#allocation2] sm:$0xff] %v65
      %68 = vst [vmem:[#allocation2 + $0x8] sm:$0xff] %v66
      %vm69 = vcmask 7168
      %70 = vst.msk [vmem:[#allocation3] sm:$0xff] %vm69, -1e+30
      %71 = vst.msk [vmem:[#allocation3 + $0x8] sm:$0xff] %vm69, -1e+30
      %72 = vst.msk [vmem:[#allocation4] sm:$0xff] %vm69, 0.0
      %73 = vst.msk [vmem:[#allocation4 + $0x8] sm:$0xff] %vm69, 0.0
      %74 = vst [vmem:[#allocation5] sm:$0xff] 0.0
      %75 = vst [vmem:[#allocation5 + $0x8] sm:$0xff] 0.0
    $region29: #{spatial_attention_layer.1} parent=1 // pred_fallthru
      _
    %v76 = vld [vmem:[%s1] sm:$0xff]
    %v77 = vld [vmem:[%s1 + $0x8] sm:$0xff]
    %v78 = vld [vmem:[%s4] sm:$0xff]
    %v79 = vld [vmem:[%s4 + $0x8] sm:$0xff]
    %v80 = vld [vmem:[%s5] sm:$0x3]
    %v82 = vperm.slane %v80, 0
    %v83 = vperm.slane %v80, 1
    %vm86 = vcmask 64512
    %v88 = vsel %vm86, %v76, 0
    %v91 = vsel %vm86, %v77, 0
    %93 = vmatpush.msra.mxu0 0.0
    %94 = vmatpush.msra.mxu0 0.0
    %95 = vmatpush.msra.mxu0 0.0
    %96 = vmatpush.msra.mxu0 0.0
    %97 = vmatpush.msra.mxu0 0.0
    %98 = vmatpush.msra.mxu0 0.0
    %99 = vmatpush.msra.mxu0 0.0
    %100 = vmatpush.msra.mxu0 0.0
    %101 = vmatpush.msra.mxu0 0.0
    %102 = vmatpush.msra.mxu0 0.0
    %103 = vmatpush.msra.mxu0 0.0
    %104 = vmatpush.msra.mxu0 0.0
    %105 = vmatpush.msra.mxu0 0.0
    %106 = vmatpush.msra.mxu0 0.0
    %107 = vmatpush.msra.mxu0 0.0
    %108 = vmatpush.msra.mxu0 %v78
    %109 = vmatmul.f32.gmra.mxu0 %v88
    %v110 = vpop.f32.mrf.mxu0
    %v111 = vadd.f32 %v82, %v110
    %112 = vmatmul.f32.gmra.mxu0 %v91
    %v113 = vpop.f32.mrf.mxu0
    %v114 = vadd.f32 %v82, %v113
    %115 = vdwg.mxu0
    %116 = vmatpush.msra.mxu0 0.0
    %117 = vmatpush.msra.mxu0 0.0
    %118 = vmatpush.msra.mxu0 0.0
    %119 = vmatpush.msra.mxu0 0.0
    %120 = vmatpush.msra.mxu0 0.0
    %121 = vmatpush.msra.mxu0 0.0
    %122 = vmatpush.msra.mxu0 0.0
    %123 = vmatpush.msra.mxu0 0.0
    %124 = vmatpush.msra.mxu0 0.0
    %125 = vmatpush.msra.mxu0 0.0
    %126 = vmatpush.msra.mxu0 0.0
    %127 = vmatpush.msra.mxu0 0.0
    %128 = vmatpush.msra.mxu0 0.0
    %129 = vmatpush.msra.mxu0 0.0
    %130 = vmatpush.msra.mxu0 0.0
    %131 = vmatpush.msra.mxu0 %v79
    %132 = vmatmul.f32.gmra.mxu0 %v88
    %v133 = vpop.f32.mrf.mxu0
    %v134 = vadd.f32 %v83, %v133
    %135 = vmatmul.f32.gmra.mxu0 %v91
    %v136 = vpop.f32.mrf.mxu0
    %v137 = vadd.f32 %v83, %v136
    %138 = vdwg.mxu0
    %v139 = vld [vmem:[#allocation2] sm:$0xff]
    %v140 = vld [vmem:[#allocation2 + $0x8] sm:$0xff]
    %141 = vmatpush.xpose.msra.mxu0 0.0
    %142 = vmatpush.xpose.msra.mxu0 0.0
    %143 = vmatpush.xpose.msra.mxu0 0.0
    %144 = vmatpush.xpose.msra.mxu0 0.0
    %145 = vmatpush.xpose.msra.mxu0 0.0
    %146 = vmatpush.xpose.msra.mxu0 0.0
    %147 = vmatpush.xpose.msra.mxu0 0.0
    %148 = vmatpush.xpose.msra.mxu0 0.0
    %149 = vmatpush.xpose.msra.mxu0 0.0
    %150 = vmatpush.xpose.msra.mxu0 0.0
    %151 = vmatpush.xpose.msra.mxu0 0.0
    %152 = vmatpush.xpose.msra.mxu0 0.0
    %153 = vmatpush.xpose.msra.mxu0 0.0
    %154 = vmatpush.xpose.msra.mxu0 0.0
    %155 = vmatpush.xpose.msra.mxu0 %v114
    %156 = vmatpush.xpose.msra.mxu0 %v111
    %157 = vmatmul.f32.gmra.mxu0 %v139
    %v158 = vpop.f32.mrf.mxu0
    %v159 = vadd.f32 0.0, %v158
    %160 = vmatmul.f32.gmra.mxu0 %v140
    %v161 = vpop.f32.mrf.mxu0
    %v162 = vadd.f32 0.0, %v161
    %163 = vdwg.mxu0
    %v164 = vld [vmem:[#allocation3] sm:$0xff]
    %v165 = vld [vmem:[#allocation3 + $0x8] sm:$0xff]
    %vm166 = vcmask 130048
    %v167 = vsel %vm166, %v159, -inf
    %168 = vmax.xlane.f32.xlu0 %v167
    %v169 = vpop.xlane.xlu0 %168
    %v170 = vsel %vm166, %v162, -inf
    %171 = vmax.xlane.f32.xlu0 %v170
    %v172 = vpop.xlane.xlu0 %171
    %v173 = vmax.f32 %v164, %v169
    %v174 = vmax.f32 %v165, %v172
    %v175 = vsub.f32 %v164, %v173
    %v176 = vsub.f32 %v165, %v174
    %v177 = vmul.f32 %v175, 1.442695
    %v178 = vpow.pop %v177
    %v179 = vmul.f32 %v176, 1.442695
    %v180 = vpow.pop %v179
    %182 = vset.pattern.permute.xlu0 0
    %183 = vperm.xlu0 %182, %v173
    %v184 = vpop.permute.xlu0 %183
    %187 = vset.pattern.permute.xlu0 0
    %188 = vperm.xlu0 %187, %v174
    %v189 = vpop.permute.xlu0 %188
    %v191 = vsub.f32 %v159, %v184
    %v192 = vsub.f32 %v162, %v189
    %v193 = vmul.f32 %v191, 1.442695
    %v194 = vpow.pop %v193
    %v195 = vmul.f32 %v192, 1.442695
    %v196 = vpow.pop %v195
    %v197 = vld [vmem:[#allocation4] sm:$0xff]
    %v198 = vld [vmem:[#allocation4 + $0x8] sm:$0xff]
    %v199 = vmul.f32 %v178, %v197
    %v200 = vmul.f32 %v180, %v198
    %v201 = vsel %vm166, %v194, 0.0
    %202 = vadd.xlane.f32.xlu0 %v201
    %v203 = vpop.xlane.xlu0 %202
    %v204 = vsel %vm166, %v196, 0.0
    %205 = vadd.xlane.f32.xlu0 %v204
    %v206 = vpop.xlane.xlu0 %205
    %v207 = vadd.f32 %v199, %v203
    %v208 = vadd.f32 %v200, %v206
    %vm209 = vcmask 7168
    %210 = vst.msk [vmem:[#allocation4] sm:$0xff] %vm209, %v207
    %211 = vst.msk [vmem:[#allocation4 + $0x8] sm:$0xff] %vm209, %v208
    %v212 = vld [vmem:[#allocation5] sm:$0xff]
    %v213 = vld [vmem:[#allocation5 + $0x8] sm:$0xff]
    %215 = vset.pattern.permute.xlu0 0
    %216 = vperm.xlu0 %215, %v178
    %v217 = vpop.permute.xlu0 %216
    %220 = vset.pattern.permute.xlu0 0
    %221 = vperm.xlu0 %220, %v180
    %v222 = vpop.permute.xlu0 %221
    %v224 = vmul.f32 %v217, %v212
    %v225 = vmul.f32 %v222, %v213
    %v227 = vsel %vm166, %v194, 0
    %v230 = vsel %vm166, %v196, 0
    %232 = vmatpush.msra.mxu0 0.0
    %233 = vmatpush.msra.mxu0 0.0
    %234 = vmatpush.msra.mxu0 0.0
    %235 = vmatpush.msra.mxu0 0.0
    %236 = vmatpush.msra.mxu0 0.0
    %237 = vmatpush.msra.mxu0 0.0
    %238 = vmatpush.msra.mxu0 0.0
    %239 = vmatpush.msra.mxu0 0.0
    %240 = vmatpush.msra.mxu0 0.0
    %241 = vmatpush.msra.mxu0 0.0
    %242 = vmatpush.msra.mxu0 0.0
    %243 = vmatpush.msra.mxu0 0.0
    %244 = vmatpush.msra.mxu0 0.0
    %245 = vmatpush.msra.mxu0 0.0
    %246 = vmatpush.msra.mxu0 %v137
    %247 = vmatpush.msra.mxu0 %v134
    %248 = vmatmul.f32.gmra.mxu0 %v227
    %v249 = vpop.f32.mrf.mxu0
    %v250 = vadd.f32 0.0, %v249
    %251 = vmatmul.f32.gmra.mxu0 %v230
    %v252 = vpop.f32.mrf.mxu0
    %v253 = vadd.f32 0.0, %v252
    %254 = vdwg.mxu0
    %v255 = vadd.f32 %v224, %v250
    %v256 = vadd.f32 %v225, %v253
    %257 = vst [vmem:[#allocation5] sm:$0xff] %v255
    %258 = vst [vmem:[#allocation5 + $0x8] sm:$0xff] %v256
    %259 = vst.msk [vmem:[#allocation3] sm:$0xff] %vm209, %v173
    %260 = vst.msk [vmem:[#allocation3 + $0x8] sm:$0xff] %vm209, %v174
    // Predicated region
    $region30: #{spatial_attention_layer.1} parent=1 // pred_check
      %p261 = pneg %p24
    $region31: #{spatial_attention_layer.1} parent=1 // pred_check_branch
      %263 = sbr.rel (%p261) target = $region33
    $region32: #{spatial_attention_layer.1} parent=1 // pred_region
      %v264 = vld [vmem:[#allocation5] sm:$0xff]
      %v265 = vld [vmem:[#allocation5 + $0x8] sm:$0xff]
      %v266 = vld [vmem:[#allocation4] sm:$0xff]
      %v267 = vld [vmem:[#allocation4 + $0x8] sm:$0xff]
      %v268 = vrcp.pop %v266
      %v269 = vrcp.pop %v267
      %271 = vset.pattern.permute.xlu0 0
      %272 = vperm.xlu0 %271, %v268
      %v273 = vpop.permute.xlu0 %272
      %276 = vset.pattern.permute.xlu0 0
      %277 = vperm.xlu0 %276, %v269
      %v278 = vpop.permute.xlu0 %277
      %v280 = vmul.f32 %v264, %v273
      %v281 = vmul.f32 %v265, %v278
      %282 = vst [vmem:[#allocation6] sm:$0xff] %v280
      %283 = vst [vmem:[#allocation6 + $0x8] sm:$0xff] %v281
    $region33: #{spatial_attention_layer.1} parent=1 // pred_fallthru
      _
    // Predicated region
    $region34: #{spatial_attention_layer.1} parent=1 // pred_check
      _
    $region35: #{spatial_attention_layer.1} parent=1 // pred_check_branch
      %285 = sbr.rel (0) target = $region37
    $region36: #{spatial_attention_layer.1} parent=1 // pred_region
      %287 = vsyncadd [#allocation7], 0
      %s288 = sshll.u32 [#allocation6], 4
      %s289 = int_to_ptr.vmem [resolvable:$true] %s288
      %s290 = sshll.u32 %s6, 4
      %s291 = int_to_ptr.hbm [resolvable:$true] %s290
      %296 = dma.vmem_to_hbm [thread:$0]  %s289, 256, %s291, [#allocation7], 128, 128, 8
    $region37: #{spatial_attention_layer.1} parent=1 // pred_fallthru
      _
    // Predicated region
    $region38: #{spatial_attention_layer.1} parent=1 // pred_check
      _
    $region39: #{spatial_attention_layer.1} parent=1 // pred_check_branch
      %298 = sbr.rel (0) target = $region41
    $region40: #{spatial_attention_layer.1} parent=1 // pred_region
      %300 = dma.done [#allocation7], 256
    $region41: #{spatial_attention_layer.1} parent=1 // pred_fallthru
      _
    %301 = vsyncpa [#allocation7], 1

</llo_original>
